<compile_context>
chip_gen: v7x
topology: tpu7x:2x2x1
jax: 0.10.0
libtpu: 0.0.40
codegen_flags: <defaults>
</compile_context>

<pallas_src>
import functools

import jax
import jax.numpy as jnp
from jax.experimental import pallas as pl
from jax.experimental.pallas import tpu as pltpu


def _round_up(a, b):
    return (a + b - 1) // b * b


def _actor_kernel(lim_ref, x_ref, w_ref, out_ref, *, C, AO, n_actions):
    """One batch tile of the actor MLP.

    lim_ref : [1, 1]         SMEM scalar (action limit)
    x_ref   : [TILE_B, C]    input probes (zero-padded features)
    w_ref   : [3*C + 8, C]   packed params: W1 | W2 | [Wmu|Wsig] | bias rows
    out_ref : [TILE_B, AO]   lanes [0:A) = mu, [A:2A) = sigma, rest = padding
    """
    lim = lim_ref[0, 0]
    x = x_ref[...]

    b1 = w_ref[3 * C + 0:3 * C + 1, :]
    b2 = w_ref[3 * C + 1:3 * C + 2, :]
    bh = w_ref[3 * C + 2:3 * C + 3, 0:AO]

    # fc1 + relu  (zero-padded feature columns contribute exactly zero)
    h1 = jnp.dot(x, w_ref[0:C, :], preferred_element_type=jnp.float32) + b1
    h1 = jnp.maximum(h1, 0.0)

    # fc2 + relu  (zero-padded hidden lanes stay exactly zero: relu(0+0)=0)
    h2 = jnp.dot(h1, w_ref[C:2 * C, :], preferred_element_type=jnp.float32) + b2
    h2 = jnp.maximum(h2, 0.0)

    # fused heads: z[:, :A] -> mu pre-activation, z[:, A:2A) -> sigma pre-activation
    z = jnp.dot(h2, w_ref[2 * C:3 * C, 0:AO],
                preferred_element_type=jnp.float32) + bh

    mu = lim * jnp.tanh(z)                                             # EUP
    sig = jnp.maximum(z, 0.0) + jnp.log1p(jnp.exp(-jnp.abs(z)))        # stable softplus

    lane = jax.lax.broadcasted_iota(jnp.int32, z.shape, dimension=1)
    out_ref[...] = jnp.where(lane < n_actions, mu, sig)                # VPU select


def pack_actor_params(params, n_states, n_hiddens, n_actions):
    """Pack all weights/biases into one [3*C + 8, C] f32 buffer (C = 128-multiple).

    Row layout:
      [0    : C   )  W1   zero-padded to C x C
      [C    : 2C  )  W2   zero-padded to C x C
      [2C   : 3C  )  [Wmu | Wsig] zero-padded to C x C
      [3C   : 3C+8)  rows 0/1/2 = b1 / b2 / [bmu|bsig] (zero-padded), rest zero
    """
    C = _round_up(max(n_states, n_hiddens, 2 * n_actions), 128)

    def pad_to(a, rows, cols):
        a = a.astype(jnp.float32)
        return jnp.pad(a, ((0, rows - a.shape[0]), (0, cols - a.shape[1])))

    w1 = pad_to(params["w1"], C, C)
    w2 = pad_to(params["w2"], C, C)
    wh = pad_to(jnp.concatenate([params["wmu"], params["wsig"]], axis=1), C, C)

    bias = jnp.zeros((8, C), jnp.float32)
    bias = bias.at[0:1, :n_hiddens].set(params["b1"].astype(jnp.float32))
    bias = bias.at[1:2, :n_hiddens].set(params["b2"].astype(jnp.float32))
    bh = jnp.concatenate([params["bmu"], params["bsig"]], axis=1).astype(jnp.float32)
    bias = bias.at[2:3, :2 * n_actions].set(bh)

    return jnp.concatenate([w1, w2, wh, bias], axis=0)  # [3C + 8, C]


def actor_forward(x, w_packed, lim, n_states, n_hiddens, n_actions):
    """x: [B, n_states] float32.  Returns (mu, sig), each [B, n_actions]."""
    del n_hiddens  # folded into the packed-buffer layout
    B = x.shape[0]
    rows, C = w_packed.shape
    AO = _round_up(2 * n_actions, 128)   # lane-dense fused head width (<= C)

    tile_b = min(512, _round_up(max(B, 1), 8))
    b_pad = _round_up(B, tile_b)
    grid = (b_pad // tile_b,)

    x_pad = jnp.pad(x.astype(jnp.float32),
                    ((0, b_pad - B), (0, C - n_states)))
    lim_arr = jnp.asarray(lim, jnp.float32).reshape(1, 1)

    kernel = functools.partial(_actor_kernel, C=C, AO=AO, n_actions=n_actions)

    out = pl.pallas_call(
        kernel,
        out_shape=jax.ShapeDtypeStruct((b_pad, AO), jnp.float32),
        grid=grid,
        in_specs=[
            # lim scalar in SMEM -> changing the limit never retraces the kernel
            pl.BlockSpec((1, 1), lambda i: (0, 0),
                         memory_space=pltpu.MemorySpace.SMEM),
            # batch tile of the (padded) input
            pl.BlockSpec((tile_b, C), lambda i: (i, 0)),
            # packed parameters: constant block index -> VMEM-resident across grid
            pl.BlockSpec((rows, C), lambda i: (0, 0)),
        ],
        # single fused, lane-dense (128-multiple wide) output slab
        out_specs=pl.BlockSpec((tile_b, AO), lambda i: (i, 0)),
        compiler_params=pltpu.CompilerParams(
            dimension_semantics=("parallel",)),
    )(lim_arr, x_pad, w_packed)

    mu = out[:B, 0:n_actions]
    sig = out[:B, n_actions:2 * n_actions]
    return mu, sig


def init_params(key, n_states, n_hiddens, n_actions):
    """Deterministic init mimicking nn.Linear default (uniform(-1/sqrt(in), 1/sqrt(in)))."""
    ks = jax.random.split(key, 8)

    def linear(kw, kb, fan_in, fan_out):
        bound = 1.0 / jnp.sqrt(jnp.float32(fan_in))
        # weight stored already transposed: [in, out]
        w = jax.random.uniform(kw, (fan_in, fan_out), jnp.float32, -bound, bound)
        b = jax.random.uniform(kb, (1, fan_out), jnp.float32, -bound, bound)
        return w, b

    w1, b1 = linear(ks[0], ks[1], n_states, n_hiddens)
    w2, b2 = linear(ks[2], ks[3], n_hiddens, n_hiddens)
    wmu, bmu = linear(ks[4], ks[5], n_hiddens, n_actions)
    wsig, bsig = linear(ks[6], ks[7], n_hiddens, n_actions)
    return dict(w1=w1, b1=b1, w2=w2, b2=b2, wmu=wmu, bmu=bmu, wsig=wsig, bsig=bsig)


def reference_forward(x, p, lim):
    h1 = jnp.maximum(x @ p["w1"] + p["b1"], 0.0)
    h2 = jnp.maximum(h1 @ p["w2"] + p["b2"], 0.0)
    mu = lim * jnp.tanh(h2 @ p["wmu"] + p["bmu"])
    sig = jax.nn.softplus(h2 @ p["wsig"] + p["bsig"])
    return mu, sig


if __name__ == "__main__":
    # Small shapes consistent with the module: pressure probes -> hidden -> jet actions.
    B, n_states, n_hiddens, n_actions = 2, 4, 32, 2
    lim = 2.0

    key = jax.random.PRNGKey(0)
    kx, kp = jax.random.split(key)
    x = jax.random.normal(kx, (B, n_states), jnp.float32)
    params = init_params(kp, n_states, n_hiddens, n_actions)

    # Pack once (amortized over however many forward calls follow).
    w_packed = pack_actor_params(params, n_states, n_hiddens, n_actions)

    mu, sig = actor_forward(x, w_packed, lim, n_states, n_hiddens, n_actions)
    jax.block_until_ready((mu, sig))

    mu_ref, sig_ref = reference_forward(x, params, lim)
    assert mu.shape == (B, n_actions) and sig.shape == (B, n_actions)
    assert jnp.allclose(mu, mu_ref, atol=1e-5), "mu mismatch"
    assert jnp.allclose(sig, sig_ref, atol=1e-5), "sig mismatch"

    # TODO(synk): save_checkpoint / load_checkpoint (file I/O) are host-side and
    # have no Pallas equivalent; only the forward pass is implemented.
    print("KERNEL_OK")
</pallas_src>

<mosaic_0001>
module attributes {stable_mosaic.version = 11 : i64} {
  func.func @_actor_kernel(%arg0: i32, %arg1: memref<1x1xf32, #tpu.memory_space<smem>>, %arg2: memref<8x128xf32, #tpu.memory_space<vmem>>, %arg3: memref<392x128xf32, #tpu.memory_space<vmem>>, %arg4: memref<8x128xf32, #tpu.memory_space<vmem>>) attributes {dimension_semantics = [#tpu.dimension_semantics<parallel>], iteration_bounds = array<i64: 1>, scalar_prefetch = 0 : i64, scratch_operands = 0 : i64, tpu.core_type = #tpu.core_type<tc>, window_params = [{transform_indices = @transform_0, window_bounds = array<i64: 1, 1>}, {transform_indices = @transform_1, window_bounds = array<i64: 8, 128>}, {pipeline_mode = #tpu.pipeline_mode<synchronous>, transform_indices = @transform_2, window_bounds = array<i64: 392, 128>}, {transform_indices = @transform_3, window_bounds = array<i64: 8, 128>}]} {
    %c0 = arith.constant 0 : index
    %c0_0 = arith.constant 0 : index
    %0 = memref.load %arg1[%c0, %c0_0] : memref<1x1xf32, #tpu.memory_space<smem>>
    %c0_1 = arith.constant 0 : index
    %c0_2 = arith.constant 0 : index
    %1 = vector.load %arg2[%c0_1, %c0_2] : memref<8x128xf32, #tpu.memory_space<vmem>>, vector<8x128xf32>
    %c384 = arith.constant 384 : index
    %c0_3 = arith.constant 0 : index
    %2 = vector.load %arg3[%c384, %c0_3] : memref<392x128xf32, #tpu.memory_space<vmem>>, vector<1x128xf32>
    %c385 = arith.constant 385 : index
    %c0_4 = arith.constant 0 : index
    %3 = vector.load %arg3[%c385, %c0_4] : memref<392x128xf32, #tpu.memory_space<vmem>>, vector<1x128xf32>
    %c386 = arith.constant 386 : index
    %c0_5 = arith.constant 0 : index
    %4 = vector.load %arg3[%c386, %c0_5] : memref<392x128xf32, #tpu.memory_space<vmem>>, vector<1x128xf32>
    %c0_6 = arith.constant 0 : index
    %c0_7 = arith.constant 0 : index
    %5 = vector.load %arg3[%c0_6, %c0_7] : memref<392x128xf32, #tpu.memory_space<vmem>>, vector<128x128xf32>
    %cst = arith.constant dense<0.000000e+00> : vector<8x128xf32>
    %6 = tpu.matmul %1, %5, %cst {dimension_numbers = #tpu.dot_dimension_numbers<[1], [0], [0], [1], [0, 0, 1, 1], [], []>} : vector<8x128xf32>, vector<128x128xf32>, vector<8x128xf32> -> vector<8x128xf32>
    %7 = vector.broadcast %2 : vector<1x128xf32> to vector<8x128xf32>
    %8 = arith.addf %6, %7 : vector<8x128xf32>
    %cst_8 = arith.constant 0.000000e+00 : f32
    %9 = vector.broadcast %cst_8 : f32 to vector<8x128xf32>
    %10 = arith.maximumf %8, %9 : vector<8x128xf32>
    %c128 = arith.constant 128 : index
    %c0_9 = arith.constant 0 : index
    %11 = vector.load %arg3[%c128, %c0_9] : memref<392x128xf32, #tpu.memory_space<vmem>>, vector<128x128xf32>
    %cst_10 = arith.constant dense<0.000000e+00> : vector<8x128xf32>
    %12 = tpu.matmul %10, %11, %cst_10 {dimension_numbers = #tpu.dot_dimension_numbers<[1], [0], [0], [1], [0, 0, 1, 1], [], []>} : vector<8x128xf32>, vector<128x128xf32>, vector<8x128xf32> -> vector<8x128xf32>
    %13 = vector.broadcast %3 : vector<1x128xf32> to vector<8x128xf32>
    %14 = arith.addf %12, %13 : vector<8x128xf32>
    %cst_11 = arith.constant 0.000000e+00 : f32
    %15 = vector.broadcast %cst_11 : f32 to vector<8x128xf32>
    %16 = arith.maximumf %14, %15 : vector<8x128xf32>
    %c256 = arith.constant 256 : index
    %c0_12 = arith.constant 0 : index
    %17 = vector.load %arg3[%c256, %c0_12] : memref<392x128xf32, #tpu.memory_space<vmem>>, vector<128x128xf32>
    %cst_13 = arith.constant dense<0.000000e+00> : vector<8x128xf32>
    %18 = tpu.matmul %16, %17, %cst_13 {dimension_numbers = #tpu.dot_dimension_numbers<[1], [0], [0], [1], [0, 0, 1, 1], [], []>} : vector<8x128xf32>, vector<128x128xf32>, vector<8x128xf32> -> vector<8x128xf32>
    %19 = vector.broadcast %4 : vector<1x128xf32> to vector<8x128xf32>
    %20 = arith.addf %18, %19 : vector<8x128xf32>
    %21 = math.tanh %20 : vector<8x128xf32>
    %22 = vector.broadcast %0 : f32 to vector<8x128xf32>
    %23 = arith.mulf %22, %21 : vector<8x128xf32>
    %cst_14 = arith.constant 0.000000e+00 : f32
    %24 = vector.broadcast %cst_14 : f32 to vector<8x128xf32>
    %25 = arith.maximumf %20, %24 : vector<8x128xf32>
    %26 = math.absf %20 : vector<8x128xf32>
    %cst_15 = arith.constant 0.000000e+00 : f32
    %27 = vector.broadcast %cst_15 : f32 to vector<8x128xf32>
    %28 = arith.subf %27, %26 : vector<8x128xf32>
    %29 = math.exp %28 : vector<8x128xf32>
    %30 = math.log1p %29 : vector<8x128xf32>
    %31 = arith.addf %25, %30 : vector<8x128xf32>
    %32 = tpu.iota {dimensions = array<i32: 1>} : vector<8x128xi32>
    %c2_i32 = arith.constant 2 : i32
    %33 = vector.broadcast %c2_i32 : i32 to vector<8x128xi32>
    %34 = arith.cmpi slt, %32, %33 : vector<8x128xi32>
    %35 = arith.select %34, %23, %31 : vector<8x128xi1>, vector<8x128xf32>
    %c0_16 = arith.constant 0 : index
    %c0_17 = arith.constant 0 : index
    %36 = vector.load %arg4[%c0_16, %c0_17] : memref<8x128xf32, #tpu.memory_space<vmem>>, vector<8x128xf32>
    tpu.vector_store %arg4[%c0_16, %c0_17], %35 {strides = array<i32>} : memref<8x128xf32, #tpu.memory_space<vmem>>, vector<8x128xf32>,
    return
  }
  func.func @transform_0(%arg0: i32) -> (i32, i32) {
    %c0_i32 = arith.constant 0 : i32
    %c0_i32_0 = arith.constant 0 : i32
    %c0_i32_1 = arith.constant 0 : i32
    return %c0_i32, %c0_i32_0 : i32, i32
  }
  func.func @transform_1(%arg0: i32) -> (i32, i32) {
    %c0_i32 = arith.constant 0 : i32
    %c0_i32_0 = arith.constant 0 : i32
    return %arg0, %c0_i32 : i32, i32
  }
  func.func @transform_2(%arg0: i32) -> (i32, i32) {
    %c0_i32 = arith.constant 0 : i32
    %c0_i32_0 = arith.constant 0 : i32
    %c0_i32_1 = arith.constant 0 : i32
    return %c0_i32, %c0_i32_0 : i32, i32
  }
  func.func @transform_3(%arg0: i32) -> (i32, i32) {
    %c0_i32 = arith.constant 0 : i32
    %c0_i32_0 = arith.constant 0 : i32
    return %arg0, %c0_i32 : i32, i32
  }
}

</mosaic_0001>

<llo_original>
// kernel: tpu_custom_call.1
$region0: #{tpu_custom_call.1}
  #allocation0 [shape = 'u32[]', space=smem, size = 0x4, offset = 0x4, fixed_abs, tag = 'smem constant byte address 0x4 - core index']
  #allocation1 [shape = 'u32[144,128]{1,0:T(1,128)}', space=vmem, size = 0x12000, scoped, tag = 'internal scratch']
  #allocation2 [shape = 'f32[1,1]{1,0:T(1,128)S(6)}', space=smem, size = 0x200, scoped, tag = 'scoped memory for tpu_custom_call.1']
  %s0 = inlined_call_operand.<no memory space> [shape: f32[1,1], index: 0, kind: input, shape index: {}]
  %s1 = inlined_call_operand.hbm [shape: f32[8,128], index: 1, kind: input, shape index: {}]
  %s2 = inlined_call_operand.hbm [shape: f32[392,128], index: 2, kind: input, shape index: {}]
  %s3 = inlined_call_operand.hbm [shape: f32[8,128], index: 3, kind: output, shape index: {}]
  %s4 = sld [smem:[#allocation0]]
  $region30: #{tpu_custom_call.1} parent=0
    _
  %s6 = ssub.s32 1, %s4
  %s7 = scalar_select 0, %s6, %s4
  %8 = sst [smem:[#allocation2]] %s0
  $region1: #{tpu_custom_call.1} parent=0
    #allocation3 [shape = 'u8[4096]{0}', space=vmem, size = 0x1000, scoped, tag = 'input window, operand 1, single buffered']
    #allocation4 [shape = 's32[1]{0}', space=sflag, size = 0x4, scoped, tag = 'scoped memory for tpu_custom_call.1']
    #allocation5 [shape = 's32[1]{0}', space=sflag, size = 0x4, scoped, tag = 'scoped memory for tpu_custom_call.1']
    #allocation6 [shape = 'u8[200704]{0}', space=vmem, size = 0x31000, scoped, tag = 'input window, operand 2, single buffered']
    #allocation7 [shape = 's32[1]{0}', space=sflag, size = 0x4, scoped, tag = 'scoped memory for tpu_custom_call.1']
    #allocation8 [shape = 'u8[4096]{0}', space=vmem, size = 0x1000, scoped, tag = 'output window, operand 0, single buffered']
    %9 = vsyncpa [#allocation4], 0
    %10 = vsyncpa [#allocation7], 0
    %11 = vsyncpa [#allocation5], 0
    // Predicated region
    $region2: #{tpu_custom_call.1} parent=1 // pred_check
      _
    $region3: #{tpu_custom_call.1} parent=1 // pred_check_branch
      %13 = sbr.rel (0) target = $region5
    $region4: #{tpu_custom_call.1} parent=1 // pred_region
      _
    $region5: #{tpu_custom_call.1} parent=1 // pred_fallthru
      _
    // Predicated region
    $region6: #{tpu_custom_call.1} parent=1 // pred_check
      _
    $region7: #{tpu_custom_call.1} parent=1 // pred_check_branch
      %15 = sbr.rel (0) target = $region9
    $region8: #{tpu_custom_call.1} parent=1 // pred_region
      %s17 = ssub.s32 128, 128
      %18 = vsyncadd [#allocation4], %s17
      %s20 = sshll.u32 [#allocation3], 4
      %s21 = int_to_ptr.vmem [resolvable:$true] %s20
      %23 = dma.hbm_to_vmem [thread:$0]  %s1, 128, %s21, [#allocation4]
    $region9: #{tpu_custom_call.1} parent=1 // pred_fallthru
      _
    // Predicated region
    $region10: #{tpu_custom_call.1} parent=1 // pred_check
      _
    $region11: #{tpu_custom_call.1} parent=1 // pred_check_branch
      %25 = sbr.rel (0) target = $region13
    $region12: #{tpu_custom_call.1} parent=1 // pred_region
      %s27 = ssub.s32 6272, 6272
      %28 = vsyncadd [#allocation7], %s27
      %s29 = sshll.u32 [#allocation6], 4
      %s30 = int_to_ptr.vmem [resolvable:$true] %s29
      %35 = dma.hbm_to_vmem [thread:$0]  %s2, 6272, %s30, [#allocation7], 128, 128, 8
    $region13: #{tpu_custom_call.1} parent=1 // pred_fallthru
      _
    // Predicated region
    $region14: #{tpu_custom_call.1} parent=1 // pred_check
      _
    $region15: #{tpu_custom_call.1} parent=1 // pred_check_branch
      %37 = sbr.rel (0) target = $region17
    $region16: #{tpu_custom_call.1} parent=1 // pred_region
      %38 = dma.done [#allocation4], 128
    $region17: #{tpu_custom_call.1} parent=1 // pred_fallthru
      _
    // Predicated region
    $region18: #{tpu_custom_call.1} parent=1 // pred_check
      _
    $region19: #{tpu_custom_call.1} parent=1 // pred_check_branch
      %40 = sbr.rel (0) target = $region21
    $region20: #{tpu_custom_call.1} parent=1 // pred_region
      %41 = dma.done [#allocation7], 6272
    $region21: #{tpu_custom_call.1} parent=1 // pred_fallthru
      _
    %s42 = sld [smem:[#allocation2]]
    %v43 = vld [vmem:[#allocation3] sm:$0xff]
    %v44 = vld [vmem:[#allocation6 + $0x180] sm:$0x1]
    %v45 = vld [vmem:[#allocation6 + $0x181] sm:$0x1]
    %v46 = vld [vmem:[#allocation6 + $0x182] sm:$0x1]
    %v47 = vld [vmem:[#allocation6] sm:$0xff]
    %v48 = vld [vmem:[#allocation6 + $0x8] sm:$0xff]
    %v49 = vld [vmem:[#allocation6 + $0x10] sm:$0xff]
    %v50 = vld [vmem:[#allocation6 + $0x18] sm:$0xff]
    %v51 = vld [vmem:[#allocation6 + $0x20] sm:$0xff]
    %v52 = vld [vmem:[#allocation6 + $0x28] sm:$0xff]
    %v53 = vld [vmem:[#allocation6 + $0x30] sm:$0xff]
    %v54 = vld [vmem:[#allocation6 + $0x38] sm:$0xff]
    %v55 = vld [vmem:[#allocation6 + $0x40] sm:$0xff]
    %v56 = vld [vmem:[#allocation6 + $0x48] sm:$0xff]
    %v57 = vld [vmem:[#allocation6 + $0x50] sm:$0xff]
    %v58 = vld [vmem:[#allocation6 + $0x58] sm:$0xff]
    %v59 = vld [vmem:[#allocation6 + $0x60] sm:$0xff]
    %v60 = vld [vmem:[#allocation6 + $0x68] sm:$0xff]
    %v61 = vld [vmem:[#allocation6 + $0x70] sm:$0xff]
    %v62 = vld [vmem:[#allocation6 + $0x78] sm:$0xff]
    %v63 = vlaneseq
    %v64 = vshrl.u32 %v63, 7
    %v65 = vsub.s32 0, %v64
    %v66 = vrot.slane %v44, %v65
    %67 = vmatprep.subr.mxu0 0.0
    %68 = vmatpush1.msra.mxu0 %v47
    %69 = vmatprep.subr.mxu0 0.0
    %70 = vmatpush1.msra.mxu0 %v48
    %71 = vmatprep.subr.mxu0 0.0
    %72 = vmatpush1.msra.mxu0 %v49
    %73 = vmatprep.subr.mxu0 0.0
    %74 = vmatpush1.msra.mxu0 %v50
    %75 = vmatprep.subr.mxu0 0.0
    %76 = vmatpush1.msra.mxu0 %v51
    %77 = vmatprep.subr.mxu0 0.0
    %78 = vmatpush1.msra.mxu0 %v52
    %79 = vmatprep.subr.mxu0 0.0
    %80 = vmatpush1.msra.mxu0 %v53
    %81 = vmatprep.subr.mxu0 0.0
    %82 = vmatpush1.msra.mxu0 %v54
    %83 = vmatprep.subr.mxu0 0.0
    %84 = vmatpush1.msra.mxu0 %v55
    %85 = vmatprep.subr.mxu0 0.0
    %86 = vmatpush1.msra.mxu0 %v56
    %87 = vmatprep.subr.mxu0 0.0
    %88 = vmatpush1.msra.mxu0 %v57
    %89 = vmatprep.subr.mxu0 0.0
    %90 = vmatpush1.msra.mxu0 %v58
    %91 = vmatprep.subr.mxu0 0.0
    %92 = vmatpush1.msra.mxu0 %v59
    %93 = vmatprep.subr.mxu0 0.0
    %94 = vmatpush1.msra.mxu0 %v60
    %95 = vmatprep.subr.mxu0 0.0
    %96 = vmatpush1.msra.mxu0 %v61
    %97 = vmatprep.subr.mxu0 0.0
    %98 = vmatpush1.msra.mxu0 %v62
    %99 = vmatprep.subr.mxu0 0.0
    %100 = vmatpush1.msra.mxu0 0.0
    %101 = vmatprep.subr.mxu0 0.0
    %102 = vmatpush1.msra.mxu0 0.0
    %103 = vmatprep.subr.mxu0 0.0
    %104 = vmatpush1.msra.mxu0 0.0
    %105 = vmatprep.subr.mxu0 0.0
    %106 = vmatpush1.msra.mxu0 0.0
    %107 = vmatprep.subr.mxu0 0.0
    %108 = vmatpush1.msra.mxu0 0.0
    %109 = vmatprep.subr.mxu0 0.0
    %110 = vmatpush1.msra.mxu0 0.0
    %111 = vmatprep.subr.mxu0 0.0
    %112 = vmatpush1.msra.mxu0 0.0
    %113 = vmatprep.subr.mxu0 0.0
    %114 = vmatpush1.msra.mxu0 0.0
    %115 = vmatprep.subr.mxu0 0.0
    %116 = vmatpush1.msra.mxu0 0.0
    %117 = vmatprep.subr.mxu0 0.0
    %118 = vmatpush1.msra.mxu0 0.0
    %119 = vmatprep.subr.mxu0 0.0
    %120 = vmatpush1.msra.mxu0 0.0
    %121 = vmatprep.subr.mxu0 0.0
    %122 = vmatpush1.msra.mxu0 0.0
    %123 = vmatprep.subr.mxu0 0.0
    %124 = vmatpush1.msra.mxu0 0.0
    %125 = vmatprep.subr.mxu0 0.0
    %126 = vmatpush1.msra.mxu0 0.0
    %127 = vmatprep.subr.mxu0 0.0
    %128 = vmatpush1.msra.mxu0 0.0
    %129 = vmatprep.subr.mxu0 0.0
    %130 = vmatpush1.msra.mxu0 0.0
    %131 = vmatprep.mubr.f32.mxu0 0.0
    %132 = vmatmul.mubr.f32.gmra.mrb[0].mxu0 %v43
    %v133 = vpop.f32.mrb[0].mxu0
    %v134 = vadd.f32 %v66, %v133
    %v135 = vpop.f32.mrb[0].mxu0
    %136 = vdwg.mxu0
    %v137 = vmax.f32 %v134, 0.0
    %v138 = vld [vmem:[#allocation6 + $0x80] sm:$0xff]
    %v139 = vld [vmem:[#allocation6 + $0x88] sm:$0xff]
    %v140 = vld [vmem:[#allocation6 + $0x90] sm:$0xff]
    %v141 = vld [vmem:[#allocation6 + $0x98] sm:$0xff]
    %v142 = vld [vmem:[#allocation6 + $0xa0] sm:$0xff]
    %v143 = vld [vmem:[#allocation6 + $0xa8] sm:$0xff]
    %v144 = vld [vmem:[#allocation6 + $0xb0] sm:$0xff]
    %v145 = vld [vmem:[#allocation6 + $0xb8] sm:$0xff]
    %v146 = vld [vmem:[#allocation6 + $0xc0] sm:$0xff]
    %v147 = vld [vmem:[#allocation6 + $0xc8] sm:$0xff]
    %v148 = vld [vmem:[#allocation6 + $0xd0] sm:$0xff]
    %v149 = vld [vmem:[#allocation6 + $0xd8] sm:$0xff]
    %v150 = vld [vmem:[#allocation6 + $0xe0] sm:$0xff]
    %v151 = vld [vmem:[#allocation6 + $0xe8] sm:$0xff]
    %v152 = vld [vmem:[#allocation6 + $0xf0] sm:$0xff]
    %v153 = vld [vmem:[#allocation6 + $0xf8] sm:$0xff]
    %v154 = vlaneseq
    %v155 = vshrl.u32 %v154, 7
    %v156 = vsub.s32 0, %v155
    %v157 = vrot.slane %v45, %v156
    %158 = vmatprep.subr.mxu0 0.0
    %159 = vmatpush1.msra.mxu0 %v138
    %160 = vmatprep.subr.mxu0 0.0
    %161 = vmatpush1.msra.mxu0 %v139
    %162 = vmatprep.subr.mxu0 0.0
    %163 = vmatpush1.msra.mxu0 %v140
    %164 = vmatprep.subr.mxu0 0.0
    %165 = vmatpush1.msra.mxu0 %v141
    %166 = vmatprep.subr.mxu0 0.0
    %167 = vmatpush1.msra.mxu0 %v142
    %168 = vmatprep.subr.mxu0 0.0
    %169 = vmatpush1.msra.mxu0 %v143
    %170 = vmatprep.subr.mxu0 0.0
    %171 = vmatpush1.msra.mxu0 %v144
    %172 = vmatprep.subr.mxu0 0.0
    %173 = vmatpush1.msra.mxu0 %v145
    %174 = vmatprep.subr.mxu0 0.0
    %175 = vmatpush1.msra.mxu0 %v146
    %176 = vmatprep.subr.mxu0 0.0
    %177 = vmatpush1.msra.mxu0 %v147
    %178 = vmatprep.subr.mxu0 0.0
    %179 = vmatpush1.msra.mxu0 %v148
    %180 = vmatprep.subr.mxu0 0.0
    %181 = vmatpush1.msra.mxu0 %v149
    %182 = vmatprep.subr.mxu0 0.0
    %183 = vmatpush1.msra.mxu0 %v150
    %184 = vmatprep.subr.mxu0 0.0
    %185 = vmatpush1.msra.mxu0 %v151
    %186 = vmatprep.subr.mxu0 0.0
    %187 = vmatpush1.msra.mxu0 %v152
    %188 = vmatprep.subr.mxu0 0.0
    %189 = vmatpush1.msra.mxu0 %v153
    %190 = vmatprep.subr.mxu0 0.0
    %191 = vmatpush1.msra.mxu0 0.0
    %192 = vmatprep.subr.mxu0 0.0
    %193 = vmatpush1.msra.mxu0 0.0
    %194 = vmatprep.subr.mxu0 0.0
    %195 = vmatpush1.msra.mxu0 0.0
    %196 = vmatprep.subr.mxu0 0.0
    %197 = vmatpush1.msra.mxu0 0.0
    %198 = vmatprep.subr.mxu0 0.0
    %199 = vmatpush1.msra.mxu0 0.0
    %200 = vmatprep.subr.mxu0 0.0
    %201 = vmatpush1.msra.mxu0 0.0
    %202 = vmatprep.subr.mxu0 0.0
    %203 = vmatpush1.msra.mxu0 0.0
    %204 = vmatprep.subr.mxu0 0.0
    %205 = vmatpush1.msra.mxu0 0.0
    %206 = vmatprep.subr.mxu0 0.0
    %207 = vmatpush1.msra.mxu0 0.0
    %208 = vmatprep.subr.mxu0 0.0
    %209 = vmatpush1.msra.mxu0 0.0
    %210 = vmatprep.subr.mxu0 0.0
    %211 = vmatpush1.msra.mxu0 0.0
    %212 = vmatprep.subr.mxu0 0.0
    %213 = vmatpush1.msra.mxu0 0.0
    %214 = vmatprep.subr.mxu0 0.0
    %215 = vmatpush1.msra.mxu0 0.0
    %216 = vmatprep.subr.mxu0 0.0
    %217 = vmatpush1.msra.mxu0 0.0
    %218 = vmatprep.subr.mxu0 0.0
    %219 = vmatpush1.msra.mxu0 0.0
    %220 = vmatprep.subr.mxu0 0.0
    %221 = vmatpush1.msra.mxu0 0.0
    %222 = vmatprep.mubr.f32.mxu0 0.0
    %223 = vmatmul.mubr.f32.gmra.mrb[0].mxu0 %v137
    %v224 = vpop.f32.mrb[0].mxu0
    %v225 = vadd.f32 %v157, %v224
    %v226 = vpop.f32.mrb[0].mxu0
    %227 = vdwg.mxu0
    %v228 = vmax.f32 %v225, 0.0
    %v229 = vld [vmem:[#allocation6 + $0x100] sm:$0xff]
    %v230 = vld [vmem:[#allocation6 + $0x108] sm:$0xff]
    %v231 = vld [vmem:[#allocation6 + $0x110] sm:$0xff]
    %v232 = vld [vmem:[#allocation6 + $0x118] sm:$0xff]
    %v233 = vld [vmem:[#allocation6 + $0x120] sm:$0xff]
    %v234 = vld [vmem:[#allocation6 + $0x128] sm:$0xff]
    %v235 = vld [vmem:[#allocation6 + $0x130] sm:$0xff]
    %v236 = vld [vmem:[#allocation6 + $0x138] sm:$0xff]
    %v237 = vld [vmem:[#allocation6 + $0x140] sm:$0xff]
    %v238 = vld [vmem:[#allocation6 + $0x148] sm:$0xff]
    %v239 = vld [vmem:[#allocation6 + $0x150] sm:$0xff]
    %v240 = vld [vmem:[#allocation6 + $0x158] sm:$0xff]
    %v241 = vld [vmem:[#allocation6 + $0x160] sm:$0xff]
    %v242 = vld [vmem:[#allocation6 + $0x168] sm:$0xff]
    %v243 = vld [vmem:[#allocation6 + $0x170] sm:$0xff]
    %v244 = vld [vmem:[#allocation6 + $0x178] sm:$0xff]
    %v245 = vlaneseq
    %v246 = vshrl.u32 %v245, 7
    %v247 = vsub.s32 0, %v246
    %v248 = vrot.slane %v46, %v247
    %249 = vmatprep.subr.mxu0 0.0
    %250 = vmatpush1.msra.mxu0 %v229
    %251 = vmatprep.subr.mxu0 0.0
    %252 = vmatpush1.msra.mxu0 %v230
    %253 = vmatprep.subr.mxu0 0.0
    %254 = vmatpush1.msra.mxu0 %v231
    %255 = vmatprep.subr.mxu0 0.0
    %256 = vmatpush1.msra.mxu0 %v232
    %257 = vmatprep.subr.mxu0 0.0
    %258 = vmatpush1.msra.mxu0 %v233
    %259 = vmatprep.subr.mxu0 0.0
    %260 = vmatpush1.msra.mxu0 %v234
    %261 = vmatprep.subr.mxu0 0.0
    %262 = vmatpush1.msra.mxu0 %v235
    %263 = vmatprep.subr.mxu0 0.0
    %264 = vmatpush1.msra.mxu0 %v236
    %265 = vmatprep.subr.mxu0 0.0
    %266 = vmatpush1.msra.mxu0 %v237
    %267 = vmatprep.subr.mxu0 0.0
    %268 = vmatpush1.msra.mxu0 %v238
    %269 = vmatprep.subr.mxu0 0.0
    %270 = vmatpush1.msra.mxu0 %v239
    %271 = vmatprep.subr.mxu0 0.0
    %272 = vmatpush1.msra.mxu0 %v240
    %273 = vmatprep.subr.mxu0 0.0
    %274 = vmatpush1.msra.mxu0 %v241
    %275 = vmatprep.subr.mxu0 0.0
    %276 = vmatpush1.msra.mxu0 %v242
    %277 = vmatprep.subr.mxu0 0.0
    %278 = vmatpush1.msra.mxu0 %v243
    %279 = vmatprep.subr.mxu0 0.0
    %280 = vmatpush1.msra.mxu0 %v244
    %281 = vmatprep.subr.mxu0 0.0
    %282 = vmatpush1.msra.mxu0 0.0
    %283 = vmatprep.subr.mxu0 0.0
    %284 = vmatpush1.msra.mxu0 0.0
    %285 = vmatprep.subr.mxu0 0.0
    %286 = vmatpush1.msra.mxu0 0.0
    %287 = vmatprep.subr.mxu0 0.0
    %288 = vmatpush1.msra.mxu0 0.0
    %289 = vmatprep.subr.mxu0 0.0
    %290 = vmatpush1.msra.mxu0 0.0
    %291 = vmatprep.subr.mxu0 0.0
    %292 = vmatpush1.msra.mxu0 0.0
    %293 = vmatprep.subr.mxu0 0.0
    %294 = vmatpush1.msra.mxu0 0.0
    %295 = vmatprep.subr.mxu0 0.0
    %296 = vmatpush1.msra.mxu0 0.0
    %297 = vmatprep.subr.mxu0 0.0
    %298 = vmatpush1.msra.mxu0 0.0
    %299 = vmatprep.subr.mxu0 0.0
    %300 = vmatpush1.msra.mxu0 0.0
    %301 = vmatprep.subr.mxu0 0.0
    %302 = vmatpush1.msra.mxu0 0.0
    %303 = vmatprep.subr.mxu0 0.0
    %304 = vmatpush1.msra.mxu0 0.0
    %305 = vmatprep.subr.mxu0 0.0
    %306 = vmatpush1.msra.mxu0 0.0
    %307 = vmatprep.subr.mxu0 0.0
    %308 = vmatpush1.msra.mxu0 0.0
    %309 = vmatprep.subr.mxu0 0.0
    %310 = vmatpush1.msra.mxu0 0.0
    %311 = vmatprep.subr.mxu0 0.0
    %312 = vmatpush1.msra.mxu0 0.0
    %313 = vmatprep.mubr.f32.mxu0 0.0
    %314 = vmatmul.mubr.f32.gmra.mrb[0].mxu0 %v228
    %v315 = vpop.f32.mrb[0].mxu0
    %v316 = vadd.f32 %v248, %v315
    %v317 = vpop.f32.mrb[0].mxu0
    %318 = vdwg.mxu0
    %v319 = vtanh.pop %v316
    %v320 = vstv %s42
    %v321 = vmul.f32 %v320, %v319
    %v322 = vmax.f32 %v316, 0.0
    %v323 = vand.u32 2147483647, %v316
    %v324 = vsub.f32 0.0, %v323
    %v325 = vmul.f32 %v324, 1.442695
    %v326 = vpow.pop %v325
    %v327 = vadd.f32 %v326, 1.0
    %v328 = vlog2.pop %v327
    %v329 = vmul.f32 %v328, 0.6931472
    %v330 = vmul.f32 -0.5, %v326
    %v331 = vadd.f32 %v330, 1.0
    %v332 = vmul.f32 %v331, %v326
    %v333 = vand.u32 2147483647, %v326
    %vm334 = vcmp.lt.f32.partialorder %v333, 0.0004427343
    %v335 = vsel %vm334, %v332, %v329
    %v336 = vadd.f32 %v322, %v335
    %v337 = vlaneseq
    %v338 = vand.u32 %v337, 127
    %vm339 = vcmp.lt.s32.totalorder %v338, 2
    %v340 = vsel %vm339, %v321, %v336
    %341 = vst [vmem:[#allocation8] sm:$0xff] %v340
    // Predicated region
    $region22: #{tpu_custom_call.1} parent=1 // pred_check
      _
    $region23: #{tpu_custom_call.1} parent=1 // pred_check_branch
      %343 = sbr.rel (0) target = $region25
    $region24: #{tpu_custom_call.1} parent=1 // pred_region
      %s345 = ssub.s32 128, 128
      %346 = vsyncadd [#allocation5], %s345
      %s348 = sshll.u32 [#allocation8], 4
      %s349 = int_to_ptr.vmem [resolvable:$true] %s348
      %351 = dma.vmem_to_hbm [thread:$0]  %s349, 128, %s3, [#allocation5]
    $region25: #{tpu_custom_call.1} parent=1 // pred_fallthru
      _
    // Predicated region
    $region26: #{tpu_custom_call.1} parent=1 // pred_check
      _
    $region27: #{tpu_custom_call.1} parent=1 // pred_check_branch
      %353 = sbr.rel (0) target = $region29
    $region28: #{tpu_custom_call.1} parent=1 // pred_region
      %354 = dma.done [#allocation5], 128
    $region29: #{tpu_custom_call.1} parent=1 // pred_fallthru
      _
    %355 = vsyncpa [#allocation4], 1
    %356 = vsyncpa [#allocation7], 1
    %357 = vsyncpa [#allocation5], 1

</llo_original>
